<compile_context>
chip_gen: v7x
topology: tpu7x:2x2x1
jax: 0.10.0
libtpu: 0.0.40
codegen_flags: <defaults>
</compile_context>

<pallas_src>
import functools
import math

import jax
import jax.numpy as jnp
from jax.experimental import pallas as pl
from jax.experimental.pallas import tpu as pltpu

LANES = 128
SUBLANES = 8
NUM_SPLITS = 2                 # leading "parallel" grid axis (v7x has 2 TCs/chip)
MAX_BLOCK_BYTES = 1 << 20      # ~1 MiB per input block per buffer


def _msle_kernel(pred_ref, tgt_ref, out_ref, *, epsilon, rows, block_rows,
                 steps_per_core, need_mask):
    c = pl.program_id(0)          # core-split index (parallel axis)
    i = pl.program_id(1)          # sequential reduction step within this split

    @pl.when(i == 0)
    def _init():
        out_ref[...] = jnp.zeros_like(out_ref)

    p = pred_ref[...].astype(jnp.float32)
    t = tgt_ref[...].astype(jnp.float32)
    eps = jnp.float32(epsilon)
    # log10(a) - log10(b) == (ln a - ln b) / ln 10; the 1/ln(10)^2 factor is
    # folded into the final scalar scale in the wrapper.  Two EUP logs, no div.
    d = jnp.log(p + eps) - jnp.log(t + eps)
    dd = d * d

    def _accum(contrib):
        # (block_rows,128) -> (block_rows//8, 8, 128) groups whole (8,128)
        # tiles (layout-preserving); the axis-0 sum is pure VPU adds into the
        # small resident output accumulator.
        out_ref[...] += contrib.reshape(-1, SUBLANES, LANES).sum(
            axis=0, keepdims=True)

    if need_mask:
        last = steps_per_core - 1

        @pl.when(i != last)
        def _full_blocks():
            _accum(dd)

        @pl.when(i == last)
        def _last_block():
            # Only the last step of each split can hold a partial (array-edge)
            # or clamped duplicate block; zero its out-of-range rows' term.
            # (jnp.where does not propagate NaNs from the unselected garbage.)
            start = (last * NUM_SPLITS + c) * block_rows
            row_ids = jax.lax.broadcasted_iota(jnp.int32, dd.shape, 0) + start
            _accum(jnp.where(row_ids < rows, dd, jnp.float32(0.0)))
    else:
        _accum(dd)


def msle_loss(pred, target, epsilon=1.0):
    assert pred.shape == target.shape
    n = pred.size
    if n == 0:
        return jnp.float32(jnp.nan)

    eps = jnp.float32(float(epsilon))
    inv_scale = 1.0 / (float(n) * (math.log(10.0) ** 2))

    flat_p = pred.reshape(-1)
    flat_t = target.reshape(-1)

    it_p = jnp.dtype(pred.dtype).itemsize
    it_t = jnp.dtype(target.dtype).itemsize
    itemsize = max(it_p, it_t)
    sub = SUBLANES * max(1, 4 // min(it_p, it_t))   # sublane packing granularity
    full_rows = n // LANES

    total = jnp.float32(0.0)
    covered = 0
    if full_rows >= sub:
        max_rows = MAX_BLOCK_BYTES // (LANES * itemsize)
        max_rows = max(sub, (max_rows // sub) * sub)
        block_rows = min(max_rows, (full_rows // sub) * sub)

        total_blocks = pl.cdiv(full_rows, block_rows)
        steps_per_core = pl.cdiv(total_blocks, NUM_SPLITS)
        assigned = steps_per_core * NUM_SPLITS
        need_mask = (full_rows != total_blocks * block_rows) or (
            assigned != total_blocks)

        covered = full_rows * LANES
        p2 = flat_p[:covered].reshape(full_rows, LANES)
        t2 = flat_t[:covered].reshape(full_rows, LANES)

        # Strided block assignment: split c handles blocks c, c+2, c+4, ...
        # so any partial / overhang block lands on the last inner step only.
        if assigned == total_blocks:
            def in_map(c, i):
                return (i * NUM_SPLITS + c, 0)
        else:
            def in_map(c, i):   # clamp the (fully masked) overhang block in-bounds
                return (jnp.minimum(i * NUM_SPLITS + c, total_blocks - 1), 0)

        partials = pl.pallas_call(
            functools.partial(
                _msle_kernel,
                epsilon=float(epsilon),
                rows=full_rows,
                block_rows=block_rows,
                steps_per_core=steps_per_core,
                need_mask=need_mask,
            ),
            out_shape=jax.ShapeDtypeStruct((NUM_SPLITS, SUBLANES, LANES),
                                           jnp.float32),
            grid=(NUM_SPLITS, steps_per_core),
            in_specs=[
                pl.BlockSpec((block_rows, LANES), in_map),
                pl.BlockSpec((block_rows, LANES), in_map),
            ],
            out_specs=pl.BlockSpec((1, SUBLANES, LANES), lambda c, i: (c, 0, 0)),
            compiler_params=pltpu.CompilerParams(
                dimension_semantics=("parallel", "arbitrary"),
            ),
        )(p2, t2)
        total = total + jnp.sum(partials)

    if covered < n:
        # <128-element lane tail (or tiny inputs): plain jnp, negligible work.
        pt = flat_p[covered:].astype(jnp.float32)
        tt = flat_t[covered:].astype(jnp.float32)
        dt = jnp.log(pt + eps) - jnp.log(tt + eps)
        total = total + jnp.sum(dt * dt)

    return total * jnp.float32(inv_scale)


def _ref_msle(pred, target, epsilon=1.0):
    lp = jnp.log10(pred.astype(jnp.float32) + epsilon)
    lt = jnp.log10(target.astype(jnp.float32) + epsilon)
    return jnp.mean((lp - lt) ** 2)


if __name__ == "__main__":
    key = jax.random.PRNGKey(0)
    k1, k2, k3, k4, k5, k6 = jax.random.split(key, 6)

    # NCHW-style image-regression shape; n % 128 == 0 path.
    pred = jax.random.uniform(k1, (2, 4, 16, 16), dtype=jnp.float32) * 10.0
    target = jax.random.uniform(k2, (2, 4, 16, 16), dtype=jnp.float32) * 10.0
    loss = jax.block_until_ready(msle_loss(pred, target, epsilon=1.0))
    ref = _ref_msle(pred, target, epsilon=1.0)
    assert jnp.allclose(loss, ref, rtol=1e-5, atol=1e-6), (loss, ref)

    # Ragged shape: exercises the partial last row-block mask + lane-tail path.
    pred2 = jax.random.uniform(k3, (3, 5, 7, 11), dtype=jnp.float32) * 10.0
    target2 = jax.random.uniform(k4, (3, 5, 7, 11), dtype=jnp.float32) * 10.0
    loss2 = jax.block_until_ready(msle_loss(pred2, target2, epsilon=1.0))
    ref2 = _ref_msle(pred2, target2, epsilon=1.0)
    assert jnp.allclose(loss2, ref2, rtol=1e-5, atol=1e-6), (loss2, ref2)

    # Tiny input: pure-jnp fallback path (n < 8*128).
    pred3 = jax.random.uniform(k5, (3, 5), dtype=jnp.float32) * 10.0
    target3 = jax.random.uniform(k6, (3, 5), dtype=jnp.float32) * 10.0
    loss3 = jax.block_until_ready(msle_loss(pred3, target3, epsilon=1.0))
    ref3 = _ref_msle(pred3, target3, epsilon=1.0)
    assert jnp.allclose(loss3, ref3, rtol=1e-5, atol=1e-6), (loss3, ref3)

    print("KERNEL_OK")
</pallas_src>

<mosaic_0001>
module attributes {stable_mosaic.version = 11 : i64} {
  func.func @_msle_kernel(%arg0: i32, %arg1: i32, %arg2: memref<16x128xf32, #tpu.memory_space<vmem>>, %arg3: memref<16x128xf32, #tpu.memory_space<vmem>>, %arg4: memref<1x8x128xf32, #tpu.memory_space<vmem>>) attributes {dimension_semantics = [#tpu.dimension_semantics<parallel>, #tpu.dimension_semantics<arbitrary>], iteration_bounds = array<i64: 2, 1>, scalar_prefetch = 0 : i64, scratch_operands = 0 : i64, tpu.core_type = #tpu.core_type<tc>, window_params = [{transform_indices = @transform_0, window_bounds = array<i64: 16, 128>}, {transform_indices = @transform_1, window_bounds = array<i64: 16, 128>}, {transform_indices = @transform_2, window_bounds = array<i64: 1, 8, 128>}]} {
    %c0_i32 = arith.constant 0 : i32
    %0 = arith.cmpi eq, %arg1, %c0_i32 : i32
    %1 = arith.extui %0 : i1 to i32
    %c0_i32_0 = arith.constant 0 : i32
    %2 = arith.cmpi ne, %1, %c0_i32_0 : i32
    scf.if %2 {
      %cst_9 = arith.constant 0.000000e+00 : f32
      %19 = vector.broadcast %cst_9 : f32 to vector<1x8x128xf32>
      %c0_10 = arith.constant 0 : index
      %c0_11 = arith.constant 0 : index
      %c0_12 = arith.constant 0 : index
      %20 = vector.load %arg4[%c0_10, %c0_11, %c0_12] : memref<1x8x128xf32, #tpu.memory_space<vmem>>, vector<1x8x128xf32>
      tpu.vector_store %arg4[%c0_10, %c0_11, %c0_12], %19 {strides = array<i32>} : memref<1x8x128xf32, #tpu.memory_space<vmem>>, vector<1x8x128xf32>,
    } else {
    }
    %c0 = arith.constant 0 : index
    %c0_1 = arith.constant 0 : index
    %3 = vector.load %arg2[%c0, %c0_1] : memref<16x128xf32, #tpu.memory_space<vmem>>, vector<16x128xf32>
    %c0_2 = arith.constant 0 : index
    %c0_3 = arith.constant 0 : index
    %4 = vector.load %arg3[%c0_2, %c0_3] : memref<16x128xf32, #tpu.memory_space<vmem>>, vector<16x128xf32>
    %cst = arith.constant 1.000000e+00 : f32
    %5 = vector.broadcast %cst : f32 to vector<16x128xf32>
    %6 = arith.addf %3, %5 : vector<16x128xf32>
    %7 = math.log %6 : vector<16x128xf32>
    %cst_4 = arith.constant 1.000000e+00 : f32
    %8 = vector.broadcast %cst_4 : f32 to vector<16x128xf32>
    %9 = arith.addf %4, %8 : vector<16x128xf32>
    %10 = math.log %9 : vector<16x128xf32>
    %11 = arith.subf %7, %10 : vector<16x128xf32>
    %12 = arith.mulf %11, %11 : vector<16x128xf32>
    %c0_i32_5 = arith.constant 0 : i32
    %13 = arith.cmpi ne, %arg1, %c0_i32_5 : i32
    %14 = arith.extui %13 : i1 to i32
    %c0_i32_6 = arith.constant 0 : i32
    %15 = arith.cmpi ne, %14, %c0_i32_6 : i32
    scf.if %15 {
      %c0_9 = arith.constant 0 : index
      %c0_10 = arith.constant 0 : index
      %c0_11 = arith.constant 0 : index
      %19 = vector.load %arg4[%c0_9, %c0_10, %c0_11] : memref<1x8x128xf32, #tpu.memory_space<vmem>>, vector<1x8x128xf32>
      %20 = vector.shape_cast %12 : vector<16x128xf32> to vector<2x8x128xf32>
      %cst_12 = arith.constant dense<0.000000e+00> : vector<8x128xf32>
      %21 = vector.multi_reduction <add>, %20, %cst_12 [0] : vector<2x8x128xf32> to vector<8x128xf32>
      %22 = vector.shape_cast %21 : vector<8x128xf32> to vector<1x8x128xf32>
      %23 = arith.addf %19, %22 : vector<1x8x128xf32>
      %c0_13 = arith.constant 0 : index
      %c0_14 = arith.constant 0 : index
      %c0_15 = arith.constant 0 : index
      %24 = vector.load %arg4[%c0_13, %c0_14, %c0_15] : memref<1x8x128xf32, #tpu.memory_space<vmem>>, vector<1x8x128xf32>
      tpu.vector_store %arg4[%c0_13, %c0_14, %c0_15], %23 {strides = array<i32>} : memref<1x8x128xf32, #tpu.memory_space<vmem>>, vector<1x8x128xf32>,
    } else {
    }
    %c0_i32_7 = arith.constant 0 : i32
    %16 = arith.cmpi eq, %arg1, %c0_i32_7 : i32
    %17 = arith.extui %16 : i1 to i32
    %c0_i32_8 = arith.constant 0 : i32
    %18 = arith.cmpi ne, %17, %c0_i32_8 : i32
    scf.if %18 {
      %c0_i32_9 = arith.constant 0 : i32
      %19 = arith.addi %c0_i32_9, %arg0 : i32
      %c16_i32 = arith.constant 16 : i32
      %20 = arith.muli %19, %c16_i32 : i32
      %21 = tpu.iota {dimensions = array<i32: 0>} : vector<16x128xi32>
      %22 = vector.broadcast %20 : i32 to vector<16x128xi32>
      %23 = arith.addi %21, %22 : vector<16x128xi32>
      %c16_i32_10 = arith.constant 16 : i32
      %24 = vector.broadcast %c16_i32_10 : i32 to vector<16x128xi32>
      %25 = arith.cmpi slt, %23, %24 : vector<16x128xi32>
      %cst_11 = arith.constant 0.000000e+00 : f32
      %26 = vector.broadcast %cst_11 : f32 to vector<16x128xf32>
      %27 = arith.select %25, %12, %26 : vector<16x128xi1>, vector<16x128xf32>
      %c0_12 = arith.constant 0 : index
      %c0_13 = arith.constant 0 : index
      %c0_14 = arith.constant 0 : index
      %28 = vector.load %arg4[%c0_12, %c0_13, %c0_14] : memref<1x8x128xf32, #tpu.memory_space<vmem>>, vector<1x8x128xf32>
      %29 = vector.shape_cast %27 : vector<16x128xf32> to vector<2x8x128xf32>
      %cst_15 = arith.constant dense<0.000000e+00> : vector<8x128xf32>
      %30 = vector.multi_reduction <add>, %29, %cst_15 [0] : vector<2x8x128xf32> to vector<8x128xf32>
      %31 = vector.shape_cast %30 : vector<8x128xf32> to vector<1x8x128xf32>
      %32 = arith.addf %28, %31 : vector<1x8x128xf32>
      %c0_16 = arith.constant 0 : index
      %c0_17 = arith.constant 0 : index
      %c0_18 = arith.constant 0 : index
      %33 = vector.load %arg4[%c0_16, %c0_17, %c0_18] : memref<1x8x128xf32, #tpu.memory_space<vmem>>, vector<1x8x128xf32>
      tpu.vector_store %arg4[%c0_16, %c0_17, %c0_18], %32 {strides = array<i32>} : memref<1x8x128xf32, #tpu.memory_space<vmem>>, vector<1x8x128xf32>,
    } else {
    }
    return
  }
  func.func @transform_0(%arg0: i32, %arg1: i32) -> (i32, i32) {
    %c2_i32 = arith.constant 2 : i32
    %0 = arith.muli %arg1, %c2_i32 : i32
    %1 = arith.addi %0, %arg0 : i32
    %c0_i32 = arith.constant 0 : i32
    %2 = arith.minsi %1, %c0_i32 : i32
    %c0_i32_0 = arith.constant 0 : i32
    %c0_i32_1 = arith.constant 0 : i32
    return %2, %c0_i32_0 : i32, i32
  }
  func.func @transform_1(%arg0: i32, %arg1: i32) -> (i32, i32) {
    %c2_i32 = arith.constant 2 : i32
    %0 = arith.muli %arg1, %c2_i32 : i32
    %1 = arith.addi %0, %arg0 : i32
    %c0_i32 = arith.constant 0 : i32
    %2 = arith.minsi %1, %c0_i32 : i32
    %c0_i32_0 = arith.constant 0 : i32
    %c0_i32_1 = arith.constant 0 : i32
    return %2, %c0_i32_0 : i32, i32
  }
  func.func @transform_2(%arg0: i32, %arg1: i32) -> (i32, i32, i32) {
    %c0_i32 = arith.constant 0 : i32
    %c0_i32_0 = arith.constant 0 : i32
    %c0_i32_1 = arith.constant 0 : i32
    return %arg0, %c0_i32, %c0_i32_0 : i32, i32, i32
  }
}

</mosaic_0001>

<llo_original>
// kernel: tpu_custom_call.1
$region0: #{tpu_custom_call.1}
  #allocation0 [shape = 'u32[]', space=smem, size = 0x4, offset = 0x4, fixed_abs, tag = 'smem constant byte address 0x4 - core index']
  #allocation1 [shape = 'u32[144,128]{1,0:T(1,128)}', space=vmem, size = 0x12000, scoped, tag = 'internal scratch']
  %s0 = inlined_call_operand.hbm [shape: f32[16,128], index: 0, kind: input, shape index: {}]
  %s1 = inlined_call_operand.hbm [shape: f32[16,128], index: 1, kind: input, shape index: {}]
  %s2 = inlined_call_operand.hbm [shape: f32[2,8,128], index: 2, kind: output, shape index: {}]
  %s3 = sld [smem:[#allocation0]]
  $region61: #{tpu_custom_call.1} parent=0
    _
  %s5 = ssub.s32 1, %s3
  %s6 = scalar_select 0, %s5, %s3
  $region1: #{tpu_custom_call.1} parent=0
    #allocation2 [shape = 'u8[16384]{0}', space=vmem, size = 0x4000, scoped, tag = 'input window, operand 0']
    #allocation3 [shape = 's32[2]{0}', space=sflag, size = 0x8, scoped, tag = 'scoped memory for tpu_custom_call.1']
    #allocation4 [shape = 's32[2]{0}', space=sflag, size = 0x8, scoped, tag = 'scoped memory for tpu_custom_call.1']
    #allocation5 [shape = 'u8[16384]{0}', space=vmem, size = 0x4000, scoped, tag = 'input window, operand 1']
    #allocation6 [shape = 's32[2]{0}', space=sflag, size = 0x8, scoped, tag = 'scoped memory for tpu_custom_call.1']
    #allocation7 [shape = 'u8[8192]{0}', space=vmem, size = 0x2000, scoped, tag = 'output window, operand 0']
    %7 = vsyncpa [#allocation3], 0
    %s8 = scalar_lea.sflag [#allocation3], 1
    %9 = vsyncpa %s8, 0
    %10 = vsyncpa [#allocation6], 0
    %s11 = scalar_lea.sflag [#allocation6], 1
    %12 = vsyncpa %s11, 0
    %13 = vsyncpa [#allocation4], 0
    %s14 = scalar_lea.sflag [#allocation4], 1
    %15 = vsyncpa %s14, 0
    loop: start=0, step=1, limit=4
    $region2: #{tpu_custom_call.1} parent=1 // loop_pre_header
      _
    $region3: #{tpu_custom_call.1} parent=1 // loop_header
      %s17 = sphi 0, %s21
      %p18 = scmp.ge.s32.totalorder %s17, 4
      %s24 = sphi 0, %s36
      %s25 = sphi 0, %s32
      %s26 = sphi 0, %s24
      %s27 = sphi 0, %s25
      %s28 = sphi 0, %s26
      %s29 = sphi 0, %s27
      %s47 = sphi 0, %s49
      %s50 = sphi 0, %s47
      %s51 = sphi 0, %s50
      %s67 = sphi 0, %s51
      %s81 = sphi 0, %s83
      %s84 = sphi 0, %s81
      %s85 = sphi 0, %s84
      %s101 = sphi 0, %s85
      %s107 = sphi 0, %s109
      %s110 = sphi 0, %s107
      %s111 = sphi 0, %s110
      %s127 = sphi 0, %s111
    $region4: #{tpu_custom_call.1} parent=1 // loop_header_branch
      %20 = sbr.rel (%p18) target = $region8
    $region5: #{tpu_custom_call.1} parent=1 // loop_body
      %s22 = ssub.s32 %s17, 1
      %s23 = ssub.s32 %s17, 2
      %s30 = sadd.s32 1, %s25
      %p31 = scmp.ge.s32.totalorder %s30, 1
      %s32 = scalar_select %p31, 0, %s30
      %s33 = sadd.s32 1, %s24
      %s34 = scalar_select %p31, %s33, %s24
      %p35 = scmp.ge.s32.totalorder %s34, 2
      %s36 = scalar_select %p35, 0, %s34
      %s37 = smul.u32 %s25, 2
      %s38 = sadd.s32 %s37, %s24
      %p39 = scmp.lt.s32.totalorder %s38, 0
      %s40 = scalar_select %p39, %s38, 0
      %s41 = smul.u32 %s32, 2
      %s42 = sadd.s32 %s41, %s36
      %p43 = scmp.lt.s32.totalorder %s42, 0
      %s44 = scalar_select %p43, %s42, 0
      %s45 = ssub.s32 %s40, %s44
      %p46 = scmp.eq.s32.totalorder %s45, 0
      %s48 = sadd.s32 %s47, 1
      %s49 = scalar_select %p46, %s47, %s48
      %p52 = pneg %p46
      %p53 = scmp.eq.s32.totalorder %s17, 1
      %p54 = por %p52, %p53
      %p55 = scmp.ne.s32.totalorder %s47, %s50
      %p56 = scmp.eq.s32.totalorder %s17, 0
      %p57 = por %p55, %p56
      %p58 = scmp.ne.s32.totalorder %s47, %s50
      %p59 = scmp.eq.s32.totalorder %s22, 1
      %p60 = por %p58, %p59
      %p61 = scmp.ne.s32.totalorder %s50, %s51
      %p62 = scmp.eq.s32.totalorder %s22, 0
      %p63 = por %p61, %p62
      %p64 = scmp.ne.s32.totalorder %s50, %s51
      %p65 = scmp.eq.s32.totalorder %s23, 1
      %p66 = por %p64, %p65
      %p68 = scmp.ne.s32.totalorder %s51, %s67
      %p69 = scmp.eq.s32.totalorder %s23, 0
      %p70 = por %p68, %p69
      %s71 = smul.u32 %s25, 2
      %s72 = sadd.s32 %s71, %s24
      %p73 = scmp.lt.s32.totalorder %s72, 0
      %s74 = scalar_select %p73, %s72, 0
      %s75 = smul.u32 %s32, 2
      %s76 = sadd.s32 %s75, %s36
      %p77 = scmp.lt.s32.totalorder %s76, 0
      %s78 = scalar_select %p77, %s76, 0
      %s79 = ssub.s32 %s74, %s78
      %p80 = scmp.eq.s32.totalorder %s79, 0
      %s82 = sadd.s32 %s81, 1
      %s83 = scalar_select %p80, %s81, %s82
      %p86 = pneg %p80
      %p87 = scmp.eq.s32.totalorder %s17, 1
      %p88 = por %p86, %p87
      %p89 = scmp.ne.s32.totalorder %s81, %s84
      %p90 = scmp.eq.s32.totalorder %s17, 0
      %p91 = por %p89, %p90
      %p92 = scmp.ne.s32.totalorder %s81, %s84
      %p93 = scmp.eq.s32.totalorder %s22, 1
      %p94 = por %p92, %p93
      %p95 = scmp.ne.s32.totalorder %s84, %s85
      %p96 = scmp.eq.s32.totalorder %s22, 0
      %p97 = por %p95, %p96
      %p98 = scmp.ne.s32.totalorder %s84, %s85
      %p99 = scmp.eq.s32.totalorder %s23, 1
      %p100 = por %p98, %p99
      %p102 = scmp.ne.s32.totalorder %s85, %s101
      %p103 = scmp.eq.s32.totalorder %s23, 0
      %p104 = por %p102, %p103
      %s105 = ssub.s32 %s24, %s36
      %p106 = scmp.eq.s32.totalorder %s105, 0
      %s108 = sadd.s32 %s107, 1
      %s109 = scalar_select %p106, %s107, %s108
      %p112 = pneg %p106
      %p113 = scmp.eq.s32.totalorder %s17, 1
      %p114 = por %p112, %p113
      %p115 = scmp.ne.s32.totalorder %s107, %s110
      %p116 = scmp.eq.s32.totalorder %s17, 0
      %p117 = por %p115, %p116
      %p118 = scmp.ne.s32.totalorder %s107, %s110
      %p119 = scmp.eq.s32.totalorder %s22, 1
      %p120 = por %p118, %p119
      %p121 = scmp.ne.s32.totalorder %s110, %s111
      %p122 = scmp.eq.s32.totalorder %s22, 0
      %p123 = por %p121, %p122
      %p124 = scmp.ne.s32.totalorder %s110, %s111
      %p125 = scmp.eq.s32.totalorder %s23, 1
      %p126 = por %p124, %p125
      %p128 = scmp.ne.s32.totalorder %s111, %s127
      %p129 = scmp.eq.s32.totalorder %s23, 0
      %p130 = por %p128, %p129
      %p131 = scmp.le.s32.totalorder 1, %s17
      %p132 = scmp.lt.s32.totalorder %s17, 3
      %p133 = pnand %p131, %p132
      %p134 = pneg %p133
      // Predicated region
      $region9: #{tpu_custom_call.1} parent=5 // pred_check
        _
      $region10: #{tpu_custom_call.1} parent=5 // pred_check_branch
        %136 = sbr.rel (%p133) target = $region12
      $region11: #{tpu_custom_call.1} parent=5 // pred_region
        %s137 = ssub.s32 %s17, 1
      $region12: #{tpu_custom_call.1} parent=5 // pred_fallthru
        _
      %p138 = scmp.lt.s32.totalorder %s17, 2
      // Predicated region
      $region13: #{tpu_custom_call.1} parent=5 // pred_check
        %p139 = pneg %p138
      $region14: #{tpu_custom_call.1} parent=5 // pred_check_branch
        %141 = sbr.rel (%p139) target = $region16
      $region15: #{tpu_custom_call.1} parent=5 // pred_region
        // Predicated region
        $region17: #{tpu_custom_call.1} parent=15 // pred_check
          %p142 = pneg %p57
        $region18: #{tpu_custom_call.1} parent=15 // pred_check_branch
          %144 = sbr.rel (%p142) target = $region20
        $region19: #{tpu_custom_call.1} parent=15 // pred_region
          %s145 = sand.u32 %s47, 1
          %s146 = scalar_lea.sflag [#allocation3], %s145
          %s147 = sand.u32 %s47, 1
          %s148 = smul.addr %s147, 16
          %s149 = scalar_lea.vmem [#allocation2], %s148
          %s150 = smul.u32 %s25, 2
          %s151 = sadd.s32 %s150, %s24
          %p152 = scmp.lt.s32.totalorder %s151, 0
          %s153 = scalar_select %p152, %s151, 0
          %s154 = smul.u32 2, %s153
          %s156 = ssub.s32 256, 256
          %157 = vsyncadd %s146, %s156
          %s158 = smul.addr %s154, 128
          %s159 = scalar_lea.hbm %s0, %s158
          %s160 = sshll.u32 %s149, 4
          %s161 = int_to_ptr.vmem [resolvable:$true] %s160
          %166 = dma.hbm_to_vmem [thread:$0]  %s159, 256, %s161, %s146, 128, 128, 8
        $region20: #{tpu_custom_call.1} parent=15 // pred_fallthru
          _
        // Predicated region
        $region21: #{tpu_custom_call.1} parent=15 // pred_check
          %p167 = pneg %p91
        $region22: #{tpu_custom_call.1} parent=15 // pred_check_branch
          %169 = sbr.rel (%p167) target = $region24
        $region23: #{tpu_custom_call.1} parent=15 // pred_region
          %s170 = sand.u32 %s81, 1
          %s171 = scalar_lea.sflag [#allocation6], %s170
          %s172 = sand.u32 %s81, 1
          %s173 = smul.addr %s172, 16
          %s174 = scalar_lea.vmem [#allocation5], %s173
          %s175 = smul.u32 %s25, 2
          %s176 = sadd.s32 %s175, %s24
          %p177 = scmp.lt.s32.totalorder %s176, 0
          %s178 = scalar_select %p177, %s176, 0
          %s179 = smul.u32 2, %s178
          %s181 = ssub.s32 256, 256
          %182 = vsyncadd %s171, %s181
          %s183 = smul.addr %s179, 128
          %s184 = scalar_lea.hbm %s1, %s183
          %s185 = sshll.u32 %s174, 4
          %s186 = int_to_ptr.vmem [resolvable:$true] %s185
          %191 = dma.hbm_to_vmem [thread:$0]  %s184, 256, %s186, %s171, 128, 128, 8
        $region24: #{tpu_custom_call.1} parent=15 // pred_fallthru
          _
      $region16: #{tpu_custom_call.1} parent=5 // pred_fallthru
        _
      %p192 = scmp.le.s32.totalorder 1, %s17
      %p193 = scmp.lt.s32.totalorder %s17, 3
      %p194 = pnand %p192, %p193
      %p195 = pneg %p194
      // Predicated region
      $region25: #{tpu_custom_call.1} parent=5 // pred_check
        _
      $region26: #{tpu_custom_call.1} parent=5 // pred_check_branch
        %197 = sbr.rel (%p194) target = $region28
      $region27: #{tpu_custom_call.1} parent=5 // pred_region
        %s198 = ssub.s32 %s17, 1
        %s199 = sand.u32 %s50, 1
        %s200 = scalar_lea.sflag [#allocation3], %s199
        %s201 = sand.u32 %s50, 1
        %s202 = smul.addr %s201, 16
        %s203 = scalar_lea.vmem [#allocation2], %s202
        // Predicated region
        $region29: #{tpu_custom_call.1} parent=27 // pred_check
          %p204 = pneg %p63
        $region30: #{tpu_custom_call.1} parent=27 // pred_check_branch
          %206 = sbr.rel (%p204) target = $region32
        $region31: #{tpu_custom_call.1} parent=27 // pred_region
          %207 = dma.done %s200, 256
        $region32: #{tpu_custom_call.1} parent=27 // pred_fallthru
          _
        %s208 = sand.u32 %s84, 1
        %s209 = scalar_lea.sflag [#allocation6], %s208
        %s210 = sand.u32 %s84, 1
        %s211 = smul.addr %s210, 16
        %s212 = scalar_lea.vmem [#allocation5], %s211
        // Predicated region
        $region33: #{tpu_custom_call.1} parent=27 // pred_check
          %p213 = pneg %p97
        $region34: #{tpu_custom_call.1} parent=27 // pred_check_branch
          %215 = sbr.rel (%p213) target = $region36
        $region35: #{tpu_custom_call.1} parent=27 // pred_region
          %216 = dma.done %s209, 256
        $region36: #{tpu_custom_call.1} parent=27 // pred_fallthru
          _
        %s217 = sand.u32 %s50, 1
        %s218 = scalar_lea.sflag [#allocation3], %s217
        %s219 = sand.u32 %s50, 1
        %s220 = smul.addr %s219, 16
        %s221 = scalar_lea.vmem [#allocation2], %s220
        %p222 = pneg %p63
        %p223 = pneg %p60
        %s224 = sand.u32 %s84, 1
        %s225 = scalar_lea.sflag [#allocation6], %s224
        %s226 = sand.u32 %s84, 1
        %s227 = smul.addr %s226, 16
        %s228 = scalar_lea.vmem [#allocation5], %s227
        %p229 = pneg %p97
        %p230 = pneg %p94
        %p231 = pneg %p123
        %p232 = pneg %p120
        %s233 = sand.u32 %s110, 1
        %s234 = scalar_lea.sflag [#allocation4], %s233
        %s235 = sand.u32 %s110, 1
        %s236 = smul.addr %s235, 8
        %s237 = scalar_lea.vmem [#allocation7], %s236
        %s238 = smul.u32 %s27, 2
        %s239 = sadd.s32 %s238, %s26
        %p240 = scmp.lt.s32.totalorder %s239, 0
        %s241 = scalar_select %p240, %s239, 0
        %s242 = smul.u32 2, %s241
        %s243 = smul.u32 %s27, 2
        %s244 = sadd.s32 %s243, %s26
        %p245 = scmp.lt.s32.totalorder %s244, 0
        %s246 = scalar_select %p245, %s244, 0
        %s247 = smul.u32 2, %s246
        %p248 = scmp.eq.s32.totalorder %s27, 0
        // Predicated region
        $region37: #{tpu_custom_call.1} parent=27 // pred_check
          %p249 = pneg %p248
        $region38: #{tpu_custom_call.1} parent=27 // pred_check_branch
          %251 = sbr.rel (%p249) target = $region40
        $region39: #{tpu_custom_call.1} parent=27 // pred_region
          %252 = vst [vmem:[%s237] sm:$0xff] 0.0
        $region40: #{tpu_custom_call.1} parent=27 // pred_fallthru
          _
        %v253 = vld [vmem:[%s203] sm:$0xff]
        %v254 = vld [vmem:[%s203 + $0x8] sm:$0xff]
        %v255 = vld [vmem:[%s212] sm:$0xff]
        %v256 = vld [vmem:[%s212 + $0x8] sm:$0xff]
        %v257 = vadd.f32 %v253, 1.0
        %v258 = vadd.f32 %v254, 1.0
        %v259 = vlog2.pop %v257
        %v260 = vmul.f32 %v259, 0.6931472
        %v261 = vlog2.pop %v258
        %v262 = vmul.f32 %v261, 0.6931472
        %v263 = vadd.f32 %v255, 1.0
        %v264 = vadd.f32 %v256, 1.0
        %v265 = vlog2.pop %v263
        %v266 = vmul.f32 %v265, 0.6931472
        %v267 = vlog2.pop %v264
        %v268 = vmul.f32 %v267, 0.6931472
        %v269 = vsub.f32 %v260, %v266
        %v270 = vsub.f32 %v262, %v268
        %v271 = vmul.f32 %v269, %v269
        %v272 = vmul.f32 %v270, %v270
        %p273 = scmp.ne.s32.totalorder %s27, 0
        // Predicated region
        $region41: #{tpu_custom_call.1} parent=27 // pred_check
          %p274 = pneg %p273
        $region42: #{tpu_custom_call.1} parent=27 // pred_check_branch
          %276 = sbr.rel (%p274) target = $region44
        $region43: #{tpu_custom_call.1} parent=27 // pred_region
          %v277 = vld [vmem:[%s237] sm:$0xff]
          %v278 = vadd.f32 %v271, %v272
          %v279 = vadd.f32 %v277, %v278
          %280 = vst [vmem:[%s237] sm:$0xff] %v279
        $region44: #{tpu_custom_call.1} parent=27 // pred_fallthru
          _
        // Predicated region
        $region45: #{tpu_custom_call.1} parent=27 // pred_check
          %p281 = pneg %p248
        $region46: #{tpu_custom_call.1} parent=27 // pred_check_branch
          %283 = sbr.rel (%p281) target = $region48
        $region47: #{tpu_custom_call.1} parent=27 // pred_region
          %s284 = smul.u32 %s26, 16
          %v285 = vlaneseq
          %v286 = vshrl.u32 %v285, 7
          %v287 = vadd.s32 %v286, 8
          %v288 = vstv %s284
          %v289 = vadd.s32 %v286, %v288
          %v290 = vadd.s32 %v287, %v288
          %vm291 = vcmp.lt.s32.totalorder %v289, 16
          %vm292 = vcmp.lt.s32.totalorder %v290, 16
          %v293 = vsel %vm291, %v271, 0.0
          %v294 = vsel %vm292, %v272, 0.0
          %v295 = vld [vmem:[%s237] sm:$0xff]
          %v296 = vadd.f32 %v293, %v294
          %v297 = vadd.f32 %v295, %v296
          %298 = vst [vmem:[%s237] sm:$0xff] %v297
        $region48: #{tpu_custom_call.1} parent=27 // pred_fallthru
          _
        %s299 = sand.u32 %s110, 1
        %s300 = scalar_lea.sflag [#allocation4], %s299
        %s301 = sand.u32 %s110, 1
        %s302 = smul.addr %s301, 8
        %s303 = scalar_lea.vmem [#allocation7], %s302
        // Predicated region
        $region49: #{tpu_custom_call.1} parent=27 // pred_check
          %p304 = pneg %p120
        $region50: #{tpu_custom_call.1} parent=27 // pred_check_branch
          %306 = sbr.rel (%p304) target = $region52
        $region51: #{tpu_custom_call.1} parent=27 // pred_region
          %s308 = ssub.s32 128, 128
          %309 = vsyncadd %s300, %s308
          %s310 = smul.addr %s26, 128
          %s311 = scalar_lea.hbm %s2, %s310
          %s313 = sshll.u32 %s303, 4
          %s314 = int_to_ptr.vmem [resolvable:$true] %s313
          %316 = dma.vmem_to_hbm [thread:$0]  %s314, 128, %s311, %s300
        $region52: #{tpu_custom_call.1} parent=27 // pred_fallthru
          _
      $region28: #{tpu_custom_call.1} parent=5 // pred_fallthru
        _
      %p317 = scmp.le.s32.totalorder 2, %s17
      // Predicated region
      $region53: #{tpu_custom_call.1} parent=5 // pred_check
        %p318 = pneg %p317
      $region54: #{tpu_custom_call.1} parent=5 // pred_check_branch
        %320 = sbr.rel (%p318) target = $region56
      $region55: #{tpu_custom_call.1} parent=5 // pred_region
        %s321 = ssub.s32 %s17, 2
        // Predicated region
        $region57: #{tpu_custom_call.1} parent=55 // pred_check
          %p322 = pneg %p126
        $region58: #{tpu_custom_call.1} parent=55 // pred_check_branch
          %324 = sbr.rel (%p322) target = $region60
        $region59: #{tpu_custom_call.1} parent=55 // pred_region
          %s325 = sand.u32 %s111, 1
          %s326 = scalar_lea.sflag [#allocation4], %s325
          %s327 = sand.u32 %s111, 1
          %s328 = smul.addr %s327, 8
          %s329 = scalar_lea.vmem [#allocation7], %s328
          %330 = dma.done %s326, 128
        $region60: #{tpu_custom_call.1} parent=55 // pred_fallthru
          _
      $region56: #{tpu_custom_call.1} parent=5 // pred_fallthru
        _
    $region6: #{tpu_custom_call.1} parent=1 // loop_footer
      %s21 = sadd.s32 1, %s17
    $region7: #{tpu_custom_call.1} parent=1 // loop_footer_branch
      %16 = sbr.rel target = $region3
    $region8: #{tpu_custom_call.1} parent=1 // loop_exit
      _
    %331 = vsyncpa [#allocation3], 1
    %s332 = scalar_lea.sflag [#allocation3], 1
    %333 = vsyncpa %s332, 1
    %334 = vsyncpa [#allocation6], 1
    %s335 = scalar_lea.sflag [#allocation6], 1
    %336 = vsyncpa %s335, 1
    %337 = vsyncpa [#allocation4], 1
    %s338 = scalar_lea.sflag [#allocation4], 1
    %339 = vsyncpa %s338, 1

</llo_original>
